<compile_context>
chip_gen: v6e
topology: v6e:2x2x1
jax: 0.10.0
libtpu: 0.0.40
codegen_flags: <defaults>
</compile_context>

<pallas_src>
import functools

import jax
import jax.numpy as jnp
from jax.experimental import pallas as pl
from jax.experimental.pallas import tpu as pltpu


def _round_up(x, m):
    return ((x + m - 1) // m) * m


# ---------------------------------------------------------------------------
# Kernel: one grid step == one timestep.  State carried in the resident
# `state_ref` output block (constant index_map across the T grid axis).
# ---------------------------------------------------------------------------
def _lstm_seq_kernel(n_lstm_p,
                     dones_ref,                       # SMEM, scalar prefetch [T]
                     ob_ref, state0_ref,
                     w_fc_ref, b_fc_ref,
                     w_g_ref, b_g_ref,
                     w_a_ref, b_a_ref,
                     prob_ref, state_ref):
    t = pl.program_id(0)

    # Initialize the recurrent carry from the provided initial state.
    @pl.when(t == 0)
    def _():
        state_ref[...] = state0_ref[...]

    # run_rnn masking: h, c *= (1 - done_t)
    mask = 1.0 - dones_ref[t]
    h = state_ref[:, :n_lstm_p] * mask
    c = state_ref[:, n_lstm_p:] * mask

    # x = relu(ob @ W_fc + b_fc)
    x = jnp.maximum(
        jnp.dot(ob_ref[0].astype(w_fc_ref.dtype), w_fc_ref[...],
                preferred_element_type=jnp.float32) + b_fc_ref[...],
        0.0,
    )

    # Fused gate matmul: (x || h) @ [W_ih ; W_hh]  (single K = n_fc_p+n_lstm_p)
    xh = jnp.concatenate([x, h], axis=1).astype(w_g_ref.dtype)
    gates = (jnp.dot(xh, w_g_ref[...], preferred_element_type=jnp.float32)
             + b_g_ref[...])

    # PyTorch LSTMCell gate order (i, f, g, o); slices are 128-lane aligned.
    i_g = jax.nn.sigmoid(gates[:, 0 * n_lstm_p:1 * n_lstm_p])
    f_g = jax.nn.sigmoid(gates[:, 1 * n_lstm_p:2 * n_lstm_p])
    g_g = jnp.tanh(gates[:, 2 * n_lstm_p:3 * n_lstm_p])
    o_g = jax.nn.sigmoid(gates[:, 3 * n_lstm_p:4 * n_lstm_p])
    c_new = f_g * c + i_g * g_g
    h_new = o_g * jnp.tanh(c_new)

    # Carry state for next step (and final-state output after last step).
    state_ref[:, :n_lstm_p] = h_new
    state_ref[:, n_lstm_p:] = c_new

    # Actor head + softmax (padded actor-bias lanes are -1e30 -> exp == 0).
    logits = (jnp.dot(h_new.astype(w_a_ref.dtype), w_a_ref[...],
                      preferred_element_type=jnp.float32) + b_a_ref[...])
    logits = logits - jnp.max(logits, axis=1, keepdims=True)
    e = jnp.exp(logits)
    inv = pl.reciprocal(jnp.sum(e, axis=1, keepdims=True), approx=False)
    prob_ref[0] = e * inv


# ---------------------------------------------------------------------------
# One-time parameter packing: PyTorch [out, in] -> [in, out], gate fusion,
# bias pre-sum, 128-lane zero padding.
# ---------------------------------------------------------------------------
def pack_params(params, dtype=jnp.float32):
    n_fc, n_s = params["w_fc"].shape
    n_lstm = params["w_hh"].shape[1]
    n_a = params["w_a"].shape[0]

    n_s_p = _round_up(n_s, 128)
    n_fc_p = _round_up(n_fc, 128)
    n_lstm_p = _round_up(n_lstm, 128)
    n_a_p = _round_up(n_a, 128)

    # fc layer
    w_fc_p = (jnp.zeros((n_s_p, n_fc_p), dtype)
              .at[:n_s, :n_fc].set(params["w_fc"].T.astype(dtype)))
    b_fc_p = jnp.zeros((1, n_fc_p), jnp.float32).at[0, :n_fc].set(params["b_fc"])

    # fused + padded LSTM gate weight: rows [0:n_fc] = W_ih^T, rows
    # [n_fc_p : n_fc_p+n_lstm] = W_hh^T; each gate gets its own 128-lane block.
    w_ih_t = params["w_ih"].T.astype(dtype)      # (n_fc, 4*n_lstm)
    w_hh_t = params["w_hh"].T.astype(dtype)      # (n_lstm, 4*n_lstm)
    b_sum = params["b_ih"] + params["b_hh"]
    w_g = jnp.zeros((n_fc_p + n_lstm_p, 4 * n_lstm_p), dtype)
    b_g = jnp.zeros((1, 4 * n_lstm_p), jnp.float32)
    for k in range(4):
        w_g = w_g.at[:n_fc, k * n_lstm_p:k * n_lstm_p + n_lstm].set(
            w_ih_t[:, k * n_lstm:(k + 1) * n_lstm])
        w_g = w_g.at[n_fc_p:n_fc_p + n_lstm,
                     k * n_lstm_p:k * n_lstm_p + n_lstm].set(
            w_hh_t[:, k * n_lstm:(k + 1) * n_lstm])
        b_g = b_g.at[0, k * n_lstm_p:k * n_lstm_p + n_lstm].set(
            b_sum[k * n_lstm:(k + 1) * n_lstm])

    # actor head; padded bias lanes -> -1e30 so they vanish in softmax.
    w_a_p = (jnp.zeros((n_lstm_p, n_a_p), dtype)
             .at[:n_lstm, :n_a].set(params["w_a"].T.astype(dtype)))
    b_a_p = (jnp.full((1, n_a_p), -1e30, jnp.float32)
             .at[0, :n_a].set(params["b_a"]))

    return {
        "dims": (n_s, n_fc, n_lstm, n_a, n_s_p, n_fc_p, n_lstm_p, n_a_p),
        "w_fc": w_fc_p, "b_fc": b_fc_p,
        "w_g": w_g, "b_g": b_g,
        "w_a": w_a_p, "b_a": b_a_p,
    }


# ---------------------------------------------------------------------------
# Rollout over a whole sequence in ONE pallas_call (grid = T timesteps).
# ---------------------------------------------------------------------------
def lstm_policy_rollout(obs, dones, states_fw, packed):
    """obs: (T, n_s), dones: (T,), states_fw: (2*n_lstm,).
    Returns (probs (T, n_a), new_states (2*n_lstm,))."""
    n_s, n_fc, n_lstm, n_a, n_s_p, n_fc_p, n_lstm_p, n_a_p = packed["dims"]
    T = obs.shape[0]

    obs_p = (jnp.zeros((T, 1, n_s_p), jnp.float32)
             .at[:, 0, :n_s].set(obs.astype(jnp.float32)))
    dones_f = jnp.asarray(dones, jnp.float32).reshape(T)
    state0_p = jnp.zeros((1, 2 * n_lstm_p), jnp.float32)
    state0_p = state0_p.at[0, :n_lstm].set(states_fw[:n_lstm])
    state0_p = state0_p.at[0, n_lstm_p:n_lstm_p + n_lstm].set(states_fw[n_lstm:])

    kernel = functools.partial(_lstm_seq_kernel, n_lstm_p)
    grid_spec = pltpu.PrefetchScalarGridSpec(
        num_scalar_prefetch=1,           # dones -> SMEM
        grid=(T,),
        in_specs=[
            pl.BlockSpec((1, 1, n_s_p), lambda t, d: (t, 0, 0)),        # obs_t
            pl.BlockSpec((1, 2 * n_lstm_p), lambda t, d: (0, 0)),       # state0
            pl.BlockSpec((n_s_p, n_fc_p), lambda t, d: (0, 0)),         # w_fc
            pl.BlockSpec((1, n_fc_p), lambda t, d: (0, 0)),             # b_fc
            pl.BlockSpec((n_fc_p + n_lstm_p, 4 * n_lstm_p),
                         lambda t, d: (0, 0)),                          # w_g
            pl.BlockSpec((1, 4 * n_lstm_p), lambda t, d: (0, 0)),       # b_g
            pl.BlockSpec((n_lstm_p, n_a_p), lambda t, d: (0, 0)),       # w_a
            pl.BlockSpec((1, n_a_p), lambda t, d: (0, 0)),              # b_a
        ],
        out_specs=(
            pl.BlockSpec((1, 1, n_a_p), lambda t, d: (t, 0, 0)),        # probs
            pl.BlockSpec((1, 2 * n_lstm_p), lambda t, d: (0, 0)),       # state
        ),
    )
    probs_p, state_p = pl.pallas_call(
        kernel,
        grid_spec=grid_spec,
        out_shape=(
            jax.ShapeDtypeStruct((T, 1, n_a_p), jnp.float32),
            jax.ShapeDtypeStruct((1, 2 * n_lstm_p), jnp.float32),
        ),
        compiler_params=pltpu.CompilerParams(
            dimension_semantics=("arbitrary",)),   # recurrent => sequential
    )(dones_f, obs_p, state0_p,
      packed["w_fc"], packed["b_fc"],
      packed["w_g"], packed["b_g"],
      packed["w_a"], packed["b_a"])

    probs = probs_p[:, 0, :n_a]
    new_state = jnp.concatenate(
        [state_p[0, :n_lstm], state_p[0, n_lstm_p:n_lstm_p + n_lstm]])
    return probs, new_state


def lstm_policy_forward(ob, done, states_fw, packed):
    """Single-step forward (out_type='p'), matching LstmPolicy.forward."""
    probs, new_state = lstm_policy_rollout(
        ob[None, :], jnp.asarray(done, jnp.float32).reshape(1), states_fw,
        packed)
    return probs[0], new_state


# ---------------------------------------------------------------------------
# Pure-JAX reference (step-by-step loop, torch semantics).
# ---------------------------------------------------------------------------
def _reference_rollout(obs, dones, states_fw, params):
    n_lstm = params["w_hh"].shape[1]
    h = states_fw[:n_lstm][None, :]
    c = states_fw[n_lstm:][None, :]
    probs = []
    for t in range(obs.shape[0]):
        x = jnp.maximum(obs[t][None, :] @ params["w_fc"].T + params["b_fc"], 0.0)
        mask = 1.0 - dones[t]
        h = h * mask
        c = c * mask
        gates = (x @ params["w_ih"].T + params["b_ih"]
                 + h @ params["w_hh"].T + params["b_hh"])
        i_g = jax.nn.sigmoid(gates[:, 0 * n_lstm:1 * n_lstm])
        f_g = jax.nn.sigmoid(gates[:, 1 * n_lstm:2 * n_lstm])
        g_g = jnp.tanh(gates[:, 2 * n_lstm:3 * n_lstm])
        o_g = jax.nn.sigmoid(gates[:, 3 * n_lstm:4 * n_lstm])
        c = f_g * c + i_g * g_g
        h = o_g * jnp.tanh(c)
        logits = h @ params["w_a"].T + params["b_a"]
        probs.append(jax.nn.softmax(logits, axis=1)[0])
    return jnp.stack(probs), jnp.concatenate([h[0], c[0]])


def init_params(key, n_s, n_fc, n_lstm, n_a):
    ks = jax.random.split(key, 8)
    s = 0.1
    return {
        "w_fc": s * jax.random.normal(ks[0], (n_fc, n_s), jnp.float32),
        "b_fc": s * jax.random.normal(ks[1], (n_fc,), jnp.float32),
        "w_ih": s * jax.random.normal(ks[2], (4 * n_lstm, n_fc), jnp.float32),
        "w_hh": s * jax.random.normal(ks[3], (4 * n_lstm, n_lstm), jnp.float32),
        "b_ih": s * jax.random.normal(ks[4], (4 * n_lstm,), jnp.float32),
        "b_hh": s * jax.random.normal(ks[5], (4 * n_lstm,), jnp.float32),
        "w_a": s * jax.random.normal(ks[6], (n_a, n_lstm), jnp.float32),
        "b_a": s * jax.random.normal(ks[7], (n_a,), jnp.float32),
    }


if __name__ == "__main__":
    n_s, n_fc, n_lstm, n_a, T = 32, 64, 64, 8, 8

    key = jax.random.PRNGKey(0)
    kp, ko, ks0 = jax.random.split(key, 3)
    params = init_params(kp, n_s, n_fc, n_lstm, n_a)
    packed = pack_params(params)                       # one-time weight prep

    obs = jax.random.normal(ko, (T, n_s), jnp.float32)
    dones = jnp.array([0., 0., 1., 0., 0., 0., 1., 0.], jnp.float32)
    states_fw = 0.1 * jax.random.normal(ks0, (2 * n_lstm,), jnp.float32)

    # --- full rollout in a single kernel call ---
    probs, new_states = lstm_policy_rollout(obs, dones, states_fw, packed)
    jax.block_until_ready((probs, new_states))

    probs_ref, new_states_ref = _reference_rollout(obs, dones, states_fw, params)
    assert probs.shape == (T, n_a)
    assert new_states.shape == (2 * n_lstm,)
    assert jnp.allclose(probs, probs_ref, atol=2e-5, rtol=1e-4)
    assert jnp.allclose(new_states, new_states_ref, atol=2e-5, rtol=1e-4)
    assert jnp.allclose(jnp.sum(probs, axis=1), 1.0, atol=1e-5)

    # --- single-step path (matches LstmPolicy.forward semantics) ---
    p1, s1 = lstm_policy_forward(obs[0], dones[0], states_fw, packed)
    jax.block_until_ready((p1, s1))
    p1_ref, s1_ref = _reference_rollout(obs[:1], dones[:1], states_fw, params)
    assert jnp.allclose(p1, p1_ref[0], atol=2e-5, rtol=1e-4)
    assert jnp.allclose(s1, s1_ref, atol=2e-5, rtol=1e-4)

    print("KERNEL_OK")
</pallas_src>

<mosaic_0001>
module attributes {stable_mosaic.version = 11 : i64} {
  func.func @_lstm_seq_kernel(%arg0: i32, %arg1: memref<8xf32, #tpu.memory_space<smem>>, %arg2: memref<1x1x128xf32, #tpu.memory_space<vmem>>, %arg3: memref<1x256xf32, #tpu.memory_space<vmem>>, %arg4: memref<128x128xf32, #tpu.memory_space<vmem>>, %arg5: memref<1x128xf32, #tpu.memory_space<vmem>>, %arg6: memref<256x512xf32, #tpu.memory_space<vmem>>, %arg7: memref<1x512xf32, #tpu.memory_space<vmem>>, %arg8: memref<128x128xf32, #tpu.memory_space<vmem>>, %arg9: memref<1x128xf32, #tpu.memory_space<vmem>>, %arg10: memref<1x1x128xf32, #tpu.memory_space<vmem>>, %arg11: memref<1x256xf32, #tpu.memory_space<vmem>>) attributes {dimension_semantics = [#tpu.dimension_semantics<arbitrary>], iteration_bounds = array<i64: 8>, scalar_prefetch = 1 : i64, scratch_operands = 0 : i64, tpu.core_type = #tpu.core_type<tc>, window_params = [{transform_indices = @transform_0, window_bounds = array<i64: 1, 1, 128>}, {pipeline_mode = #tpu.pipeline_mode<synchronous>, transform_indices = @transform_1, window_bounds = array<i64: 1, 256>}, {pipeline_mode = #tpu.pipeline_mode<synchronous>, transform_indices = @transform_2, window_bounds = array<i64: 128, 128>}, {pipeline_mode = #tpu.pipeline_mode<synchronous>, transform_indices = @transform_3, window_bounds = array<i64: 1, 128>}, {pipeline_mode = #tpu.pipeline_mode<synchronous>, transform_indices = @transform_4, window_bounds = array<i64: 256, 512>}, {pipeline_mode = #tpu.pipeline_mode<synchronous>, transform_indices = @transform_5, window_bounds = array<i64: 1, 512>}, {pipeline_mode = #tpu.pipeline_mode<synchronous>, transform_indices = @transform_6, window_bounds = array<i64: 128, 128>}, {pipeline_mode = #tpu.pipeline_mode<synchronous>, transform_indices = @transform_7, window_bounds = array<i64: 1, 128>}, {transform_indices = @transform_8, window_bounds = array<i64: 1, 1, 128>}, {pipeline_mode = #tpu.pipeline_mode<synchronous>, transform_indices = @transform_9, window_bounds = array<i64: 1, 256>}]} {
    %c0_i32 = arith.constant 0 : i32
    %0 = arith.cmpi eq, %arg0, %c0_i32 : i32
    %1 = arith.extui %0 : i1 to i32
    %c0_i32_0 = arith.constant 0 : i32
    %2 = arith.cmpi ne, %1, %c0_i32_0 : i32
    scf.if %2 {
      %c0_34 = arith.constant 0 : index
      %c0_35 = arith.constant 0 : index
      %69 = vector.load %arg3[%c0_34, %c0_35] : memref<1x256xf32, #tpu.memory_space<vmem>>, vector<1x256xf32>
      %c0_36 = arith.constant 0 : index
      %c0_37 = arith.constant 0 : index
      %70 = vector.load %arg11[%c0_36, %c0_37] : memref<1x256xf32, #tpu.memory_space<vmem>>, vector<1x256xf32>
      tpu.vector_store %arg11[%c0_36, %c0_37], %69 {strides = array<i32>} : memref<1x256xf32, #tpu.memory_space<vmem>>, vector<1x256xf32>,
    } else {
    }
    %3 = arith.index_cast %arg0 : i32 to index
    %4 = memref.load %arg1[%3] : memref<8xf32, #tpu.memory_space<smem>>
    %cst = arith.constant 1.000000e+00 : f32
    %5 = arith.subf %cst, %4 : f32
    %c0 = arith.constant 0 : index
    %c0_1 = arith.constant 0 : index
    %6 = vector.load %arg11[%c0, %c0_1] : memref<1x256xf32, #tpu.memory_space<vmem>>, vector<1x128xf32>
    %7 = vector.broadcast %5 : f32 to vector<1x128xf32>
    %8 = arith.mulf %6, %7 : vector<1x128xf32>
    %c0_2 = arith.constant 0 : index
    %c128 = arith.constant 128 : index
    %9 = vector.load %arg11[%c0_2, %c128] : memref<1x256xf32, #tpu.memory_space<vmem>>, vector<1x128xf32>
    %10 = vector.broadcast %5 : f32 to vector<1x128xf32>
    %11 = arith.mulf %9, %10 : vector<1x128xf32>
    %c0_3 = arith.constant 0 : index
    %c0_4 = arith.constant 0 : index
    %c0_5 = arith.constant 0 : index
    %12 = vector.load %arg2[%c0_3, %c0_4, %c0_5] : memref<1x1x128xf32, #tpu.memory_space<vmem>>, vector<1x1x128xf32>
    %13 = vector.shape_cast %12 : vector<1x1x128xf32> to vector<1x128xf32>
    %c0_6 = arith.constant 0 : index
    %c0_7 = arith.constant 0 : index
    %14 = vector.load %arg4[%c0_6, %c0_7] : memref<128x128xf32, #tpu.memory_space<vmem>>, vector<128x128xf32>
    %cst_8 = arith.constant dense<0.000000e+00> : vector<1x128xf32>
    %15 = tpu.matmul %13, %14, %cst_8 {dimension_numbers = #tpu.dot_dimension_numbers<[1], [0], [0], [1], [0, 0, 1, 1], [], []>} : vector<1x128xf32>, vector<128x128xf32>, vector<1x128xf32> -> vector<1x128xf32>
    %c0_9 = arith.constant 0 : index
    %c0_10 = arith.constant 0 : index
    %16 = vector.load %arg5[%c0_9, %c0_10] : memref<1x128xf32, #tpu.memory_space<vmem>>, vector<1x128xf32>
    %17 = arith.addf %15, %16 : vector<1x128xf32>
    %cst_11 = arith.constant 0.000000e+00 : f32
    %18 = vector.broadcast %cst_11 : f32 to vector<1x128xf32>
    %19 = arith.maximumf %17, %18 : vector<1x128xf32>
    %20 = tpu.concatenate %19, %8 in 1 : vector<1x128xf32>, vector<1x128xf32> -> vector<1x256xf32>
    %c0_12 = arith.constant 0 : index
    %c0_13 = arith.constant 0 : index
    %21 = vector.load %arg6[%c0_12, %c0_13] : memref<256x512xf32, #tpu.memory_space<vmem>>, vector<256x512xf32>
    %cst_14 = arith.constant dense<0.000000e+00> : vector<1x512xf32>
    %22 = tpu.matmul %20, %21, %cst_14 {dimension_numbers = #tpu.dot_dimension_numbers<[1], [0], [0], [1], [0, 0, 1, 1], [], []>} : vector<1x256xf32>, vector<256x512xf32>, vector<1x512xf32> -> vector<1x512xf32>
    %c0_15 = arith.constant 0 : index
    %c0_16 = arith.constant 0 : index
    %23 = vector.load %arg7[%c0_15, %c0_16] : memref<1x512xf32, #tpu.memory_space<vmem>>, vector<1x512xf32>
    %24 = arith.addf %22, %23 : vector<1x512xf32>
    %25 = vector.extract_strided_slice %24 {offsets = [0, 0], sizes = [1, 128], strides = [1, 1]} : vector<1x512xf32> to vector<1x128xf32>
    %26 = arith.negf %25 : vector<1x128xf32>
    %27 = math.exp %26 : vector<1x128xf32>
    %cst_17 = arith.constant 1.000000e+00 : f32
    %28 = vector.broadcast %cst_17 : f32 to vector<1x128xf32>
    %29 = arith.addf %28, %27 : vector<1x128xf32>
    %30 = arith.divf %28, %29 : vector<1x128xf32>
    %31 = vector.extract_strided_slice %24 {offsets = [0, 128], sizes = [1, 128], strides = [1, 1]} : vector<1x512xf32> to vector<1x128xf32>
    %32 = arith.negf %31 : vector<1x128xf32>
    %33 = math.exp %32 : vector<1x128xf32>
    %cst_18 = arith.constant 1.000000e+00 : f32
    %34 = vector.broadcast %cst_18 : f32 to vector<1x128xf32>
    %35 = arith.addf %34, %33 : vector<1x128xf32>
    %36 = arith.divf %34, %35 : vector<1x128xf32>
    %37 = vector.extract_strided_slice %24 {offsets = [0, 256], sizes = [1, 128], strides = [1, 1]} : vector<1x512xf32> to vector<1x128xf32>
    %38 = math.tanh %37 : vector<1x128xf32>
    %39 = vector.extract_strided_slice %24 {offsets = [0, 384], sizes = [1, 128], strides = [1, 1]} : vector<1x512xf32> to vector<1x128xf32>
    %40 = arith.negf %39 : vector<1x128xf32>
    %41 = math.exp %40 : vector<1x128xf32>
    %cst_19 = arith.constant 1.000000e+00 : f32
    %42 = vector.broadcast %cst_19 : f32 to vector<1x128xf32>
    %43 = arith.addf %42, %41 : vector<1x128xf32>
    %44 = arith.divf %42, %43 : vector<1x128xf32>
    %45 = arith.mulf %36, %11 : vector<1x128xf32>
    %46 = arith.mulf %30, %38 : vector<1x128xf32>
    %47 = arith.addf %45, %46 : vector<1x128xf32>
    %48 = math.tanh %47 : vector<1x128xf32>
    %49 = arith.mulf %44, %48 : vector<1x128xf32>
    %c0_20 = arith.constant 0 : index
    %c0_21 = arith.constant 0 : index
    %50 = vector.load %arg11[%c0_20, %c0_21] : memref<1x256xf32, #tpu.memory_space<vmem>>, vector<1x128xf32>
    tpu.vector_store %arg11[%c0_20, %c0_21], %49 {strides = array<i32>} : memref<1x256xf32, #tpu.memory_space<vmem>>, vector<1x128xf32>,
    %c0_22 = arith.constant 0 : index
    %c128_23 = arith.constant 128 : index
    %51 = vector.load %arg11[%c0_22, %c128_23] : memref<1x256xf32, #tpu.memory_space<vmem>>, vector<1x128xf32>
    tpu.vector_store %arg11[%c0_22, %c128_23], %47 {strides = array<i32>} : memref<1x256xf32, #tpu.memory_space<vmem>>, vector<1x128xf32>,
    %c0_24 = arith.constant 0 : index
    %c0_25 = arith.constant 0 : index
    %52 = vector.load %arg8[%c0_24, %c0_25] : memref<128x128xf32, #tpu.memory_space<vmem>>, vector<128x128xf32>
    %cst_26 = arith.constant dense<0.000000e+00> : vector<1x128xf32>
    %53 = tpu.matmul %49, %52, %cst_26 {dimension_numbers = #tpu.dot_dimension_numbers<[1], [0], [0], [1], [0, 0, 1, 1], [], []>} : vector<1x128xf32>, vector<128x128xf32>, vector<1x128xf32> -> vector<1x128xf32>
    %c0_27 = arith.constant 0 : index
    %c0_28 = arith.constant 0 : index
    %54 = vector.load %arg9[%c0_27, %c0_28] : memref<1x128xf32, #tpu.memory_space<vmem>>, vector<1x128xf32>
    %55 = arith.addf %53, %54 : vector<1x128xf32>
    %cst_29 = arith.constant dense<0xFF800000> : vector<1xf32>
    %56 = vector.multi_reduction <maximumf>, %55, %cst_29 [1] : vector<1x128xf32> to vector<1xf32>
    %57 = vector.shape_cast %56 : vector<1xf32> to vector<1x1xf32>
    %58 = vector.broadcast %57 : vector<1x1xf32> to vector<1x128xf32>
    %59 = arith.subf %55, %58 : vector<1x128xf32>
    %60 = math.exp %59 : vector<1x128xf32>
    %cst_30 = arith.constant dense<0.000000e+00> : vector<1xf32>
    %61 = vector.multi_reduction <add>, %60, %cst_30 [1] : vector<1x128xf32> to vector<1xf32>
    %62 = vector.shape_cast %61 : vector<1xf32> to vector<1x1xf32>
    %63 = tpu.reciprocal %62 : vector<1x1xf32> -> vector<1x1xf32>
    %64 = vector.broadcast %63 : vector<1x1xf32> to vector<1x128xf32>
    %65 = arith.mulf %60, %64 : vector<1x128xf32>
    %c0_31 = arith.constant 0 : index
    %c0_32 = arith.constant 0 : index
    %c0_33 = arith.constant 0 : index
    %66 = vector.load %arg10[%c0_31, %c0_32, %c0_33] : memref<1x1x128xf32, #tpu.memory_space<vmem>>, vector<1x1x128xf32>
    %67 = vector.shape_cast %66 : vector<1x1x128xf32> to vector<1x128xf32>
    %68 = vector.shape_cast %65 : vector<1x128xf32> to vector<1x1x128xf32>
    tpu.vector_store %arg10[%c0_31, %c0_32, %c0_33], %68 {strides = array<i32>} : memref<1x1x128xf32, #tpu.memory_space<vmem>>, vector<1x1x128xf32>,
    return
  }
  func.func @transform_0(%arg0: i32, %arg1: memref<8xf32, #tpu.memory_space<smem>>) -> (i32, i32, i32) {
    %c0_i32 = arith.constant 0 : i32
    %c0_i32_0 = arith.constant 0 : i32
    %c0_i32_1 = arith.constant 0 : i32
    return %arg0, %c0_i32, %c0_i32_0 : i32, i32, i32
  }
  func.func @transform_1(%arg0: i32, %arg1: memref<8xf32, #tpu.memory_space<smem>>) -> (i32, i32) {
    %c0_i32 = arith.constant 0 : i32
    %c0_i32_0 = arith.constant 0 : i32
    %c0_i32_1 = arith.constant 0 : i32
    return %c0_i32, %c0_i32_0 : i32, i32
  }
  func.func @transform_2(%arg0: i32, %arg1: memref<8xf32, #tpu.memory_space<smem>>) -> (i32, i32) {
    %c0_i32 = arith.constant 0 : i32
    %c0_i32_0 = arith.constant 0 : i32
    %c0_i32_1 = arith.constant 0 : i32
    return %c0_i32, %c0_i32_0 : i32, i32
  }
  func.func @transform_3(%arg0: i32, %arg1: memref<8xf32, #tpu.memory_space<smem>>) -> (i32, i32) {
    %c0_i32 = arith.constant 0 : i32
    %c0_i32_0 = arith.constant 0 : i32
    %c0_i32_1 = arith.constant 0 : i32
    return %c0_i32, %c0_i32_0 : i32, i32
  }
  func.func @transform_4(%arg0: i32, %arg1: memref<8xf32, #tpu.memory_space<smem>>) -> (i32, i32) {
    %c0_i32 = arith.constant 0 : i32
    %c0_i32_0 = arith.constant 0 : i32
    %c0_i32_1 = arith.constant 0 : i32
    return %c0_i32, %c0_i32_0 : i32, i32
  }
  func.func @transform_5(%arg0: i32, %arg1: memref<8xf32, #tpu.memory_space<smem>>) -> (i32, i32) {
    %c0_i32 = arith.constant 0 : i32
    %c0_i32_0 = arith.constant 0 : i32
    %c0_i32_1 = arith.constant 0 : i32
    return %c0_i32, %c0_i32_0 : i32, i32
  }
  func.func @transform_6(%arg0: i32, %arg1: memref<8xf32, #tpu.memory_space<smem>>) -> (i32, i32) {
    %c0_i32 = arith.constant 0 : i32
    %c0_i32_0 = arith.constant 0 : i32
    %c0_i32_1 = arith.constant 0 : i32
    return %c0_i32, %c0_i32_0 : i32, i32
  }
  func.func @transform_7(%arg0: i32, %arg1: memref<8xf32, #tpu.memory_space<smem>>) -> (i32, i32) {
    %c0_i32 = arith.constant 0 : i32
    %c0_i32_0 = arith.constant 0 : i32
    %c0_i32_1 = arith.constant 0 : i32
    return %c0_i32, %c0_i32_0 : i32, i32
  }
  func.func @transform_8(%arg0: i32, %arg1: memref<8xf32, #tpu.memory_space<smem>>) -> (i32, i32, i32) {
    %c0_i32 = arith.constant 0 : i32
    %c0_i32_0 = arith.constant 0 : i32
    %c0_i32_1 = arith.constant 0 : i32
    return %arg0, %c0_i32, %c0_i32_0 : i32, i32, i32
  }
  func.func @transform_9(%arg0: i32, %arg1: memref<8xf32, #tpu.memory_space<smem>>) -> (i32, i32) {
    %c0_i32 = arith.constant 0 : i32
    %c0_i32_0 = arith.constant 0 : i32
    %c0_i32_1 = arith.constant 0 : i32
    return %c0_i32, %c0_i32_0 : i32, i32
  }
}

</mosaic_0001>

<llo_original>
// kernel: tpu_custom_call.1
$region0: #{tpu_custom_call.1}
  #allocation0 [shape = 'u32[]', space=smem, size = 0x4, offset = 0x4, fixed_abs, tag = 'smem constant byte address 0x4 - core index']
  #allocation1 [shape = 'u32[144,128]{1,0:T(1,128)}', space=vmem, size = 0x12000, scoped, tag = 'internal scratch']
  #allocation2 [shape = 's32[1]{0}', space=sflag, size = 0x4, scoped, tag = 'scoped memory for tpu_custom_call.1']
  #allocation3 [shape = 'u8[512]{0}', space=smem, size = 0x200, scoped, tag = 'prefetched SMEM operand 0']
  %s0 = inlined_call_operand.hbm [shape: f32[8], index: 0, kind: input, shape index: {}]
  %s1 = inlined_call_operand.hbm [shape: f32[8,1,128], index: 1, kind: input, shape index: {}]
  %s2 = inlined_call_operand.vmem [shape: f32[1,256], index: 2, kind: input, shape index: {}]
  %s3 = inlined_call_operand.hbm [shape: f32[128,128], index: 3, kind: input, shape index: {}]
  %s4 = inlined_call_operand.vmem [shape: f32[1,128], index: 4, kind: input, shape index: {}]
  %s5 = inlined_call_operand.hbm [shape: f32[256,512], index: 5, kind: input, shape index: {}]
  %s6 = inlined_call_operand.vmem [shape: f32[1,512], index: 6, kind: input, shape index: {}]
  %s7 = inlined_call_operand.hbm [shape: f32[128,128], index: 7, kind: input, shape index: {}]
  %s8 = inlined_call_operand.vmem [shape: f32[1,128], index: 8, kind: input, shape index: {}]
  %s9 = inlined_call_operand.hbm [shape: f32[8,1,128], index: 9, kind: output, shape index: {0}]
  %s10 = inlined_call_operand.hbm [shape: f32[1,256], index: 10, kind: output, shape index: {1}]
  %11 = xla_tuple %s9, %s10
  %s12 = sld [smem:[#allocation0]]
  $region93: #{tpu_custom_call.1} parent=0
    _
  %s14 = ssub.s32 1, %s12
  %s15 = scalar_select 0, %s14, %s12
  %17 = dma.hbm_to_smem %s0, 16, [#allocation3], [#allocation2]
  %18 = dma.done [#allocation2], 16
  %19 = sfence
  $region1: #{tpu_custom_call.1} parent=0
    #allocation4 [shape = 'u8[1024]{0}', space=vmem, size = 0x400, scoped, tag = 'input window, operand 1']
    #allocation5 [shape = 's32[2]{0}', space=sflag, size = 0x8, scoped, tag = 'scoped memory for tpu_custom_call.1']
    #allocation6 [shape = 's32[2]{0}', space=sflag, size = 0x8, scoped, tag = 'scoped memory for tpu_custom_call.1']
    #allocation7 [shape = 'u8[65536]{0}', space=vmem, size = 0x10000, scoped, tag = 'input window, operand 3, single buffered']
    #allocation8 [shape = 's32[1]{0}', space=sflag, size = 0x4, scoped, tag = 'scoped memory for tpu_custom_call.1']
    #allocation9 [shape = 'u8[524288]{0}', space=vmem, size = 0x80000, scoped, tag = 'input window, operand 5, single buffered']
    #allocation10 [shape = 'u8[65536]{0}', space=vmem, size = 0x10000, scoped, tag = 'input window, operand 7, single buffered']
    #allocation11 [shape = 's32[1]{0}', space=sflag, size = 0x4, scoped, tag = 'scoped memory for tpu_custom_call.1']
    #allocation12 [shape = 'u8[1024]{0}', space=vmem, size = 0x400, scoped, tag = 'output window, operand 0']
    #allocation13 [shape = 'u8[1024]{0}', space=vmem, size = 0x400, scoped, tag = 'output window, operand 1, single buffered']
    #allocation14 [shape = 's32[1]{0}', space=sflag, size = 0x4, scoped, tag = 'scoped memory for tpu_custom_call.1']
    %20 = vsyncpa [#allocation5], 0
    %s21 = scalar_lea.sflag [#allocation5], 1
    %22 = vsyncpa %s21, 0
    %23 = vsyncpa [#allocation8], 0
    %24 = vsyncpa [#allocation11], 0
    %25 = vsyncpa [#allocation6], 0
    %s26 = scalar_lea.sflag [#allocation6], 1
    %27 = vsyncpa %s26, 0
    %28 = vsyncpa [#allocation14], 0
    loop: start=0, step=1, limit=10
    $region2: #{tpu_custom_call.1} parent=1 // loop_pre_header
      _
    $region3: #{tpu_custom_call.1} parent=1 // loop_header
      %s30 = sphi 0, %s34
      %p31 = scmp.ge.s32.totalorder %s30, 10
      %s40 = sphi 0, %s42
      %s43 = sphi 0, %s40
      %s44 = sphi 0, %s43
      %s60 = sphi 0, %s44
      %s64 = sphi 0, %s64
      %s66 = sphi 0, %s64
      %s67 = sphi 0, %s66
      %s81 = sphi 0, %s67
      %s85 = sphi 0, %s85
      %s87 = sphi 0, %s85
      %s88 = sphi 0, %s87
      %s102 = sphi 0, %s88
      %s106 = sphi 0, %s106
      %s108 = sphi 0, %s106
      %s109 = sphi 0, %s108
      %s123 = sphi 0, %s109
      %s127 = sphi 0, %s127
      %s129 = sphi 0, %s127
      %s130 = sphi 0, %s129
      %s144 = sphi 0, %s130
      %s148 = sphi 0, %s148
      %s150 = sphi 0, %s148
      %s151 = sphi 0, %s150
      %s165 = sphi 0, %s151
      %s169 = sphi 0, %s169
      %s171 = sphi 0, %s169
      %s172 = sphi 0, %s171
      %s186 = sphi 0, %s172
      %s190 = sphi 0, %s190
      %s192 = sphi 0, %s190
      %s193 = sphi 0, %s192
      %s207 = sphi 0, %s193
      %s213 = sphi 0, %s215
      %s216 = sphi 0, %s213
      %s217 = sphi 0, %s216
      %s233 = sphi 0, %s217
      %s237 = sphi 0, %s237
      %s239 = sphi 0, %s237
      %s240 = sphi 0, %s239
      %s254 = sphi 0, %s240
    $region4: #{tpu_custom_call.1} parent=1 // loop_header_branch
      %33 = sbr.rel (%p31) target = $region8
    $region5: #{tpu_custom_call.1} parent=1 // loop_body
      %s35 = ssub.s32 %s30, 1
      %s36 = ssub.s32 %s30, 2
      %s37 = sadd.s32 %s30, 1
      %s38 = ssub.s32 %s30, %s37
      %p39 = scmp.eq.s32.totalorder %s38, 0
      %s41 = sadd.s32 %s40, 1
      %s42 = scalar_select %p39, %s40, %s41
      %p45 = pneg %p39
      %p46 = scmp.eq.s32.totalorder %s30, 7
      %p47 = por %p45, %p46
      %p48 = scmp.ne.s32.totalorder %s40, %s43
      %p49 = scmp.eq.s32.totalorder %s30, 0
      %p50 = por %p48, %p49
      %p51 = scmp.ne.s32.totalorder %s40, %s43
      %p52 = scmp.eq.s32.totalorder %s35, 7
      %p53 = por %p51, %p52
      %p54 = scmp.ne.s32.totalorder %s43, %s44
      %p55 = scmp.eq.s32.totalorder %s35, 0
      %p56 = por %p54, %p55
      %p57 = scmp.ne.s32.totalorder %s43, %s44
      %p58 = scmp.eq.s32.totalorder %s36, 7
      %p59 = por %p57, %p58
      %p61 = scmp.ne.s32.totalorder %s44, %s60
      %p62 = scmp.eq.s32.totalorder %s36, 0
      %p63 = por %p61, %p62
      %s65 = sadd.s32 %s64, 1
      %p68 = scmp.eq.s32.totalorder %s30, 7
      %p69 = scmp.ne.s32.totalorder %s64, %s66
      %p70 = scmp.eq.s32.totalorder %s30, 0
      %p71 = por %p69, %p70
      %p72 = scmp.ne.s32.totalorder %s64, %s66
      %p73 = scmp.eq.s32.totalorder %s35, 7
      %p74 = por %p72, %p73
      %p75 = scmp.ne.s32.totalorder %s66, %s67
      %p76 = scmp.eq.s32.totalorder %s35, 0
      %p77 = por %p75, %p76
      %p78 = scmp.ne.s32.totalorder %s66, %s67
      %p79 = scmp.eq.s32.totalorder %s36, 7
      %p80 = por %p78, %p79
      %p82 = scmp.ne.s32.totalorder %s67, %s81
      %p83 = scmp.eq.s32.totalorder %s36, 0
      %p84 = por %p82, %p83
      %s86 = sadd.s32 %s85, 1
      %p89 = scmp.eq.s32.totalorder %s30, 7
      %p90 = scmp.ne.s32.totalorder %s85, %s87
      %p91 = scmp.eq.s32.totalorder %s30, 0
      %p92 = por %p90, %p91
      %p93 = scmp.ne.s32.totalorder %s85, %s87
      %p94 = scmp.eq.s32.totalorder %s35, 7
      %p95 = por %p93, %p94
      %p96 = scmp.ne.s32.totalorder %s87, %s88
      %p97 = scmp.eq.s32.totalorder %s35, 0
      %p98 = por %p96, %p97
      %p99 = scmp.ne.s32.totalorder %s87, %s88
      %p100 = scmp.eq.s32.totalorder %s36, 7
      %p101 = por %p99, %p100
      %p103 = scmp.ne.s32.totalorder %s88, %s102
      %p104 = scmp.eq.s32.totalorder %s36, 0
      %p105 = por %p103, %p104
      %s107 = sadd.s32 %s106, 1
      %p110 = scmp.eq.s32.totalorder %s30, 7
      %p111 = scmp.ne.s32.totalorder %s106, %s108
      %p112 = scmp.eq.s32.totalorder %s30, 0
      %p113 = por %p111, %p112
      %p114 = scmp.ne.s32.totalorder %s106, %s108
      %p115 = scmp.eq.s32.totalorder %s35, 7
      %p116 = por %p114, %p115
      %p117 = scmp.ne.s32.totalorder %s108, %s109
      %p118 = scmp.eq.s32.totalorder %s35, 0
      %p119 = por %p117, %p118
      %p120 = scmp.ne.s32.totalorder %s108, %s109
      %p121 = scmp.eq.s32.totalorder %s36, 7
      %p122 = por %p120, %p121
      %p124 = scmp.ne.s32.totalorder %s109, %s123
      %p125 = scmp.eq.s32.totalorder %s36, 0
      %p126 = por %p124, %p125
      %s128 = sadd.s32 %s127, 1
      %p131 = scmp.eq.s32.totalorder %s30, 7
      %p132 = scmp.ne.s32.totalorder %s127, %s129
      %p133 = scmp.eq.s32.totalorder %s30, 0
      %p134 = por %p132, %p133
      %p135 = scmp.ne.s32.totalorder %s127, %s129
      %p136 = scmp.eq.s32.totalorder %s35, 7
      %p137 = por %p135, %p136
      %p138 = scmp.ne.s32.totalorder %s129, %s130
      %p139 = scmp.eq.s32.totalorder %s35, 0
      %p140 = por %p138, %p139
      %p141 = scmp.ne.s32.totalorder %s129, %s130
      %p142 = scmp.eq.s32.totalorder %s36, 7
      %p143 = por %p141, %p142
      %p145 = scmp.ne.s32.totalorder %s130, %s144
      %p146 = scmp.eq.s32.totalorder %s36, 0
      %p147 = por %p145, %p146
      %s149 = sadd.s32 %s148, 1
      %p152 = scmp.eq.s32.totalorder %s30, 7
      %p153 = scmp.ne.s32.totalorder %s148, %s150
      %p154 = scmp.eq.s32.totalorder %s30, 0
      %p155 = por %p153, %p154
      %p156 = scmp.ne.s32.totalorder %s148, %s150
      %p157 = scmp.eq.s32.totalorder %s35, 7
      %p158 = por %p156, %p157
      %p159 = scmp.ne.s32.totalorder %s150, %s151
      %p160 = scmp.eq.s32.totalorder %s35, 0
      %p161 = por %p159, %p160
      %p162 = scmp.ne.s32.totalorder %s150, %s151
      %p163 = scmp.eq.s32.totalorder %s36, 7
      %p164 = por %p162, %p163
      %p166 = scmp.ne.s32.totalorder %s151, %s165
      %p167 = scmp.eq.s32.totalorder %s36, 0
      %p168 = por %p166, %p167
      %s170 = sadd.s32 %s169, 1
      %p173 = scmp.eq.s32.totalorder %s30, 7
      %p174 = scmp.ne.s32.totalorder %s169, %s171
      %p175 = scmp.eq.s32.totalorder %s30, 0
      %p176 = por %p174, %p175
      %p177 = scmp.ne.s32.totalorder %s169, %s171
      %p178 = scmp.eq.s32.totalorder %s35, 7
      %p179 = por %p177, %p178
      %p180 = scmp.ne.s32.totalorder %s171, %s172
      %p181 = scmp.eq.s32.totalorder %s35, 0
      %p182 = por %p180, %p181
      %p183 = scmp.ne.s32.totalorder %s171, %s172
      %p184 = scmp.eq.s32.totalorder %s36, 7
      %p185 = por %p183, %p184
      %p187 = scmp.ne.s32.totalorder %s172, %s186
      %p188 = scmp.eq.s32.totalorder %s36, 0
      %p189 = por %p187, %p188
      %s191 = sadd.s32 %s190, 1
      %p194 = scmp.eq.s32.totalorder %s30, 7
      %p195 = scmp.ne.s32.totalorder %s190, %s192
      %p196 = scmp.eq.s32.totalorder %s30, 0
      %p197 = por %p195, %p196
      %p198 = scmp.ne.s32.totalorder %s190, %s192
      %p199 = scmp.eq.s32.totalorder %s35, 7
      %p200 = por %p198, %p199
      %p201 = scmp.ne.s32.totalorder %s192, %s193
      %p202 = scmp.eq.s32.totalorder %s35, 0
      %p203 = por %p201, %p202
      %p204 = scmp.ne.s32.totalorder %s192, %s193
      %p205 = scmp.eq.s32.totalorder %s36, 7
      %p206 = por %p204, %p205
      %p208 = scmp.ne.s32.totalorder %s193, %s207
      %p209 = scmp.eq.s32.totalorder %s36, 0
      %p210 = por %p208, %p209
      %s211 = ssub.s32 %s30, %s37
      %p212 = scmp.eq.s32.totalorder %s211, 0
      %s214 = sadd.s32 %s213, 1
      %s215 = scalar_select %p212, %s213, %s214
      %p218 = pneg %p212
      %p219 = scmp.eq.s32.totalorder %s30, 7
      %p220 = por %p218, %p219
      %p221 = scmp.ne.s32.totalorder %s213, %s216
      %p222 = scmp.eq.s32.totalorder %s30, 0
      %p223 = por %p221, %p222
      %p224 = scmp.ne.s32.totalorder %s213, %s216
      %p225 = scmp.eq.s32.totalorder %s35, 7
      %p226 = por %p224, %p225
      %p227 = scmp.ne.s32.totalorder %s216, %s217
      %p228 = scmp.eq.s32.totalorder %s35, 0
      %p229 = por %p227, %p228
      %p230 = scmp.ne.s32.totalorder %s216, %s217
      %p231 = scmp.eq.s32.totalorder %s36, 7
      %p232 = por %p230, %p231
      %p234 = scmp.ne.s32.totalorder %s217, %s233
      %p235 = scmp.eq.s32.totalorder %s36, 0
      %p236 = por %p234, %p235
      %s238 = sadd.s32 %s237, 1
      %p241 = scmp.eq.s32.totalorder %s30, 7
      %p242 = scmp.ne.s32.totalorder %s237, %s239
      %p243 = scmp.eq.s32.totalorder %s30, 0
      %p244 = por %p242, %p243
      %p245 = scmp.ne.s32.totalorder %s237, %s239
      %p246 = scmp.eq.s32.totalorder %s35, 7
      %p247 = por %p245, %p246
      %p248 = scmp.ne.s32.totalorder %s239, %s240
      %p249 = scmp.eq.s32.totalorder %s35, 0
      %p250 = por %p248, %p249
      %p251 = scmp.ne.s32.totalorder %s239, %s240
      %p252 = scmp.eq.s32.totalorder %s36, 7
      %p253 = por %p251, %p252
      %p255 = scmp.ne.s32.totalorder %s240, %s254
      %p256 = scmp.eq.s32.totalorder %s36, 0
      %p257 = por %p255, %p256
      %p258 = scmp.le.s32.totalorder 1, %s30
      %p259 = scmp.lt.s32.totalorder %s30, 9
      %p260 = pnand %p258, %p259
      %p261 = pneg %p260
      // Predicated region
      $region9: #{tpu_custom_call.1} parent=5 // pred_check
        _
      $region10: #{tpu_custom_call.1} parent=5 // pred_check_branch
        %263 = sbr.rel (%p260) target = $region12
      $region11: #{tpu_custom_call.1} parent=5 // pred_region
        %s264 = ssub.s32 %s30, 1
        // Predicated region
        $region13: #{tpu_custom_call.1} parent=11 // pred_check
          %p265 = pneg %p77
        $region14: #{tpu_custom_call.1} parent=11 // pred_check_branch
          %267 = sbr.rel (%p265) target = $region16
        $region15: #{tpu_custom_call.1} parent=11 // pred_region
          _
        $region16: #{tpu_custom_call.1} parent=11 // pred_fallthru
          _
        // Predicated region
        $region17: #{tpu_custom_call.1} parent=11 // pred_check
          %p268 = pneg %p98
        $region18: #{tpu_custom_call.1} parent=11 // pred_check_branch
          %270 = sbr.rel (%p268) target = $region20
        $region19: #{tpu_custom_call.1} parent=11 // pred_region
          %s272 = ssub.s32 2048, 2048
          %273 = vsyncadd [#allocation8], %s272
          %s274 = sshll.u32 [#allocation7], 4
          %s275 = int_to_ptr.vmem [resolvable:$true] %s274
          %280 = dma.hbm_to_vmem [thread:$0]  %s3, 2048, %s275, [#allocation8], 128, 128, 8
        $region20: #{tpu_custom_call.1} parent=11 // pred_fallthru
          _
        // Predicated region
        $region21: #{tpu_custom_call.1} parent=11 // pred_check
          %p281 = pneg %p119
        $region22: #{tpu_custom_call.1} parent=11 // pred_check_branch
          %283 = sbr.rel (%p281) target = $region24
        $region23: #{tpu_custom_call.1} parent=11 // pred_region
          _
        $region24: #{tpu_custom_call.1} parent=11 // pred_fallthru
          _
        // Predicated region
        $region25: #{tpu_custom_call.1} parent=11 // pred_check
          %p284 = pneg %p140
        $region26: #{tpu_custom_call.1} parent=11 // pred_check_branch
          %286 = sbr.rel (%p284) target = $region28
        $region27: #{tpu_custom_call.1} parent=11 // pred_region
          %s288 = ssub.s32 16384, 16384
          %289 = vsyncadd [#allocation8], %s288
          %s290 = sshll.u32 [#allocation9], 4
          %s291 = int_to_ptr.vmem [resolvable:$true] %s290
          %296 = dma.hbm_to_vmem [thread:$0]  %s5, 16384, %s291, [#allocation8], 512, 512, 32
        $region28: #{tpu_custom_call.1} parent=11 // pred_fallthru
          _
        // Predicated region
        $region29: #{tpu_custom_call.1} parent=11 // pred_check
          %p297 = pneg %p161
        $region30: #{tpu_custom_call.1} parent=11 // pred_check_branch
          %299 = sbr.rel (%p297) target = $region32
        $region31: #{tpu_custom_call.1} parent=11 // pred_region
          _
        $region32: #{tpu_custom_call.1} parent=11 // pred_fallthru
          _
        // Predicated region
        $region33: #{tpu_custom_call.1} parent=11 // pred_check
          %p300 = pneg %p182
        $region34: #{tpu_custom_call.1} parent=11 // pred_check_branch
          %302 = sbr.rel (%p300) target = $region36
        $region35: #{tpu_custom_call.1} parent=11 // pred_region
          %s304 = ssub.s32 2048, 2048
          %305 = vsyncadd [#allocation11], %s304
          %s306 = sshll.u32 [#allocation10], 4
          %s307 = int_to_ptr.vmem [resolvable:$true] %s306
          %312 = dma.hbm_to_vmem [thread:$0]  %s7, 2048, %s307, [#allocation11], 128, 128, 8
        $region36: #{tpu_custom_call.1} parent=11 // pred_fallthru
          _
        // Predicated region
        $region37: #{tpu_custom_call.1} parent=11 // pred_check
          %p313 = pneg %p203
        $region38: #{tpu_custom_call.1} parent=11 // pred_check_branch
          %315 = sbr.rel (%p313) target = $region40
        $region39: #{tpu_custom_call.1} parent=11 // pred_region
          _
        $region40: #{tpu_custom_call.1} parent=11 // pred_fallthru
          _
      $region12: #{tpu_custom_call.1} parent=5 // pred_fallthru
        _
      %p316 = scmp.lt.s32.totalorder %s30, 8
      // Predicated region
      $region41: #{tpu_custom_call.1} parent=5 // pred_check
        %p317 = pneg %p316
      $region42: #{tpu_custom_call.1} parent=5 // pred_check_branch
        %319 = sbr.rel (%p317) target = $region44
      $region43: #{tpu_custom_call.1} parent=5 // pred_region
        // Predicated region
        $region45: #{tpu_custom_call.1} parent=43 // pred_check
          %p320 = pneg %p50
        $region46: #{tpu_custom_call.1} parent=43 // pred_check_branch
          %322 = sbr.rel (%p320) target = $region48
        $region47: #{tpu_custom_call.1} parent=43 // pred_region
          %s323 = sand.u32 %s40, 1
          %s324 = scalar_lea.sflag [#allocation5], %s323
          %s325 = sand.u32 %s40, 1
          %s326 = scalar_lea.vmem [#allocation4], %s325
          %s328 = ssub.s32 16, 16
          %329 = vsyncadd %s324, %s328
          %s330 = smul.addr %s30, 16
          %s331 = scalar_lea.hbm %s1, %s330
          %s333 = sshll.u32 %s326, 4
          %s334 = int_to_ptr.vmem [resolvable:$true] %s333
          %336 = dma.hbm_to_vmem [thread:$0]  %s331, 16, %s334, %s324
        $region48: #{tpu_custom_call.1} parent=43 // pred_fallthru
          _
      $region44: #{tpu_custom_call.1} parent=5 // pred_fallthru
        _
      %p337 = scmp.le.s32.totalorder 1, %s30
      %p338 = scmp.lt.s32.totalorder %s30, 9
      %p339 = pnand %p337, %p338
      %p340 = pneg %p339
      // Predicated region
      $region49: #{tpu_custom_call.1} parent=5 // pred_check
        _
      $region50: #{tpu_custom_call.1} parent=5 // pred_check_branch
        %342 = sbr.rel (%p339) target = $region52
      $region51: #{tpu_custom_call.1} parent=5 // pred_region
        %s343 = ssub.s32 %s30, 1
        %s344 = sand.u32 %s43, 1
        %s345 = scalar_lea.sflag [#allocation5], %s344
        %s346 = sand.u32 %s43, 1
        %s347 = scalar_lea.vmem [#allocation4], %s346
        // Predicated region
        $region53: #{tpu_custom_call.1} parent=51 // pred_check
          %p348 = pneg %p56
        $region54: #{tpu_custom_call.1} parent=51 // pred_check_branch
          %350 = sbr.rel (%p348) target = $region56
        $region55: #{tpu_custom_call.1} parent=51 // pred_region
          %351 = dma.done %s345, 16
        $region56: #{tpu_custom_call.1} parent=51 // pred_fallthru
          _
        // Predicated region
        $region57: #{tpu_custom_call.1} parent=51 // pred_check
          %p352 = pneg %p98
        $region58: #{tpu_custom_call.1} parent=51 // pred_check_branch
          %354 = sbr.rel (%p352) target = $region60
        $region59: #{tpu_custom_call.1} parent=51 // pred_region
          %355 = dma.done [#allocation8], 2048
        $region60: #{tpu_custom_call.1} parent=51 // pred_fallthru
          _
        // Predicated region
        $region61: #{tpu_custom_call.1} parent=51 // pred_check
          %p356 = pneg %p140
        $region62: #{tpu_custom_call.1} parent=51 // pred_check_branch
          %358 = sbr.rel (%p356) target = $region64
        $region63: #{tpu_custom_call.1} parent=51 // pred_region
          %359 = dma.done [#allocation8], 16384
        $region64: #{tpu_custom_call.1} parent=51 // pred_fallthru
          _
        // Predicated region
        $region65: #{tpu_custom_call.1} parent=51 // pred_check
          %p360 = pneg %p182
        $region66: #{tpu_custom_call.1} parent=51 // pred_check_branch
          %362 = sbr.rel (%p360) target = $region68
        $region67: #{tpu_custom_call.1} parent=51 // pred_region
          %363 = dma.done [#allocation11], 2048
        $region68: #{tpu_custom_call.1} parent=51 // pred_fallthru
          _
        %s364 = sand.u32 %s43, 1
        %s365 = scalar_lea.sflag [#allocation5], %s364
        %s366 = sand.u32 %s43, 1
        %s367 = scalar_lea.vmem [#allocation4], %s366
        %p368 = pneg %p56
        %p369 = pneg %p53
        %p370 = pneg %p77
        %p371 = pneg %p74
        %p372 = pneg %p98
        %p373 = pneg %p95
        %p374 = pneg %p119
        %p375 = pneg %p116
        %p376 = pneg %p140
        %p377 = pneg %p137
        %p378 = pneg %p161
        %p379 = pneg %p158
        %p380 = pneg %p182
        %p381 = pneg %p179
        %p382 = pneg %p203
        %p383 = pneg %p200
        %p384 = pneg %p229
        %p385 = pneg %p226
        %s386 = sand.u32 %s216, 1
        %s387 = scalar_lea.sflag [#allocation6], %s386
        %s388 = sand.u32 %s216, 1
        %s389 = scalar_lea.vmem [#allocation12], %s388
        %p390 = pneg %p250
        %p391 = pneg %p247
        %p392 = scmp.eq.s32.totalorder %s35, 0
        // Predicated region
        $region69: #{tpu_custom_call.1} parent=51 // pred_check
          %p393 = pneg %p392
        $region70: #{tpu_custom_call.1} parent=51 // pred_check_branch
          %395 = sbr.rel (%p393) target = $region72
        $region71: #{tpu_custom_call.1} parent=51 // pred_region
          %v396 = vld [vmem:[%s2] sm:$0x3]
          %v397 = vlaneseq
          %vm398 = vcmp.ge.s32.totalorder %v397, 0
          %vm399 = vcmp.lt.s32.totalorder %v397, 256
          %vm400 = vmand %vm398, %vm399
          %401 = vst.msk [vmem:[#allocation13] sm:$0x3] %vm400, %v396
        $region72: #{tpu_custom_call.1} parent=51 // pred_fallthru
          _
        %s402 = sld [smem:[#allocation3 + %s35]]
        %s403 = ssub.f32 1.0, %s402
        %v404 = vld [vmem:[#allocation13] sm:$0x1]
        %v405 = vstv %s403
        %v406 = vmul.f32 %v404, %v405
        %v407 = vld [vmem:[#allocation13 + $0x1] sm:$0x1]
        %v408 = vmul.f32 %v407, %v405
        %v409 = vld [vmem:[%s347] sm:$0x1]
        %v410 = vld [vmem:[#allocation7] sm:$0xff]
        %v411 = vld [vmem:[#allocation7 + $0x8] sm:$0xff]
        %v412 = vld [vmem:[#allocation7 + $0x10] sm:$0xff]
        %v413 = vld [vmem:[#allocation7 + $0x18] sm:$0xff]
        %v414 = vld [vmem:[#allocation7 + $0x20] sm:$0xff]
        %v415 = vld [vmem:[#allocation7 + $0x28] sm:$0xff]
        %v416 = vld [vmem:[#allocation7 + $0x30] sm:$0xff]
        %v417 = vld [vmem:[#allocation7 + $0x38] sm:$0xff]
        %v418 = vld [vmem:[#allocation7 + $0x40] sm:$0xff]
        %v419 = vld [vmem:[#allocation7 + $0x48] sm:$0xff]
        %v420 = vld [vmem:[#allocation7 + $0x50] sm:$0xff]
        %v421 = vld [vmem:[#allocation7 + $0x58] sm:$0xff]
        %v422 = vld [vmem:[#allocation7 + $0x60] sm:$0xff]
        %v423 = vld [vmem:[#allocation7 + $0x68] sm:$0xff]
        %v424 = vld [vmem:[#allocation7 + $0x70] sm:$0xff]
        %v425 = vld [vmem:[#allocation7 + $0x78] sm:$0xff]
        %v426 = vld [vmem:[%s4] sm:$0x1]
        %427 = vmatprep.subr.mxu0 0.0
        %428 = vmatpush1.msra.mxu0 %v425
        %429 = vmatprep.subr.mxu0 0.0
        %430 = vmatpush1.msra.mxu0 %v424
        %431 = vmatprep.subr.mxu0 0.0
        %432 = vmatpush1.msra.mxu0 %v423
        %433 = vmatprep.subr.mxu0 0.0
        %434 = vmatpush1.msra.mxu0 %v422
        %435 = vmatprep.subr.mxu0 0.0
        %436 = vmatpush1.msra.mxu0 %v421
        %437 = vmatprep.subr.mxu0 0.0
        %438 = vmatpush1.msra.mxu0 %v420
        %439 = vmatprep.subr.mxu0 0.0
        %440 = vmatpush1.msra.mxu0 %v419
        %441 = vmatprep.subr.mxu0 0.0
        %442 = vmatpush1.msra.mxu0 %v418
        %443 = vmatprep.subr.mxu0 0.0
        %444 = vmatpush1.msra.mxu0 %v417
        %445 = vmatprep.subr.mxu0 0.0
        %446 = vmatpush1.msra.mxu0 %v416
        %447 = vmatprep.subr.mxu0 0.0
        %448 = vmatpush1.msra.mxu0 %v415
        %449 = vmatprep.subr.mxu0 0.0
        %450 = vmatpush1.msra.mxu0 %v414
        %451 = vmatprep.subr.mxu0 0.0
        %452 = vmatpush1.msra.mxu0 %v413
        %453 = vmatprep.subr.mxu0 0.0
        %454 = vmatpush1.msra.mxu0 %v412
        %455 = vmatprep.subr.mxu0 0.0
        %456 = vmatpush1.msra.mxu0 %v411
        %457 = vmatprep.subr.mxu0 0.0
        %458 = vmatpush1.msra.mxu0 %v410
        %459 = vmatprep.subr.mxu0 0.0
        %460 = vmatpush2.msra.mxu0 0.0
        %461 = vmatprep.subr.mxu0 0.0
        %462 = vmatpush2.msra.mxu0 0.0
        %463 = vmatprep.subr.mxu0 0.0
        %464 = vmatpush2.msra.mxu0 0.0
        %465 = vmatprep.subr.mxu0 0.0
        %466 = vmatpush2.msra.mxu0 0.0
        %467 = vmatprep.subr.mxu0 0.0
        %468 = vmatpush2.msra.mxu0 0.0
        %469 = vmatprep.subr.mxu0 0.0
        %470 = vmatpush2.msra.mxu0 0.0
        %471 = vmatprep.subr.mxu0 0.0
        %472 = vmatpush2.msra.mxu0 0.0
        %473 = vmatprep.subr.mxu0 0.0
        %474 = vmatpush2.msra.mxu0 0.0
        %475 = vmatprep.subr.mxu0 0.0
        %476 = vmatpush2.msra.mxu0 0.0
        %477 = vmatprep.subr.mxu0 0.0
        %478 = vmatpush2.msra.mxu0 0.0
        %479 = vmatprep.subr.mxu0 0.0
        %480 = vmatpush2.msra.mxu0 0.0
        %481 = vmatprep.subr.mxu0 0.0
        %482 = vmatpush2.msra.mxu0 0.0
        %483 = vmatprep.subr.mxu0 0.0
        %484 = vmatpush2.msra.mxu0 0.0
        %485 = vmatprep.subr.mxu0 0.0
        %486 = vmatpush2.msra.mxu0 0.0
        %487 = vmatprep.subr.mxu0 0.0
        %488 = vmatpush2.msra.mxu0 0.0
        %489 = vmatprep.subr.mxu0 0.0
        %490 = vmatpush2.msra.mxu0 0.0
        %491 = vmatprep.mubr.f32.mxu0 0.0
        %492 = vmatmul.mubr.f32.gmra.mxu0 %v409
        %v493 = vpop.f32.mrf.mxu0
        %v494 = vadd.f32 %v426, %v493
        %v495 = vpop.f32.mrf.mxu0
        %496 = vdwg.mxu0
        %v497 = vmax.f32 %v494, 0.0
        %v498 = vld [vmem:[#allocation9] sm:$0xff]
        %v499 = vld [vmem:[#allocation9 + $0x8] sm:$0xff]
        %v500 = vld [vmem:[#allocation9 + $0x10] sm:$0xff]
        %v501 = vld [vmem:[#allocation9 + $0x18] sm:$0xff]
        %v502 = vld [vmem:[#allocation9 + $0x20] sm:$0xff]
        %v503 = vld [vmem:[#allocation9 + $0x28] sm:$0xff]
        %v504 = vld [vmem:[#allocation9 + $0x30] sm:$0xff]
        %v505 = vld [vmem:[#allocation9 + $0x38] sm:$0xff]
        %v506 = vld [vmem:[#allocation9 + $0x40] sm:$0xff]
        %v507 = vld [vmem:[#allocation9 + $0x48] sm:$0xff]
        %v508 = vld [vmem:[#allocation9 + $0x50] sm:$0xff]
        %v509 = vld [vmem:[#allocation9 + $0x58] sm:$0xff]
        %v510 = vld [vmem:[#allocation9 + $0x60] sm:$0xff]
        %v511 = vld [vmem:[#allocation9 + $0x68] sm:$0xff]
        %v512 = vld [vmem:[#allocation9 + $0x70] sm:$0xff]
        %v513 = vld [vmem:[#allocation9 + $0x78] sm:$0xff]
        %v514 = vld [vmem:[#allocation9 + $0x80] sm:$0xff]
        %v515 = vld [vmem:[#allocation9 + $0x88] sm:$0xff]
        %v516 = vld [vmem:[#allocation9 + $0x90] sm:$0xff]
        %v517 = vld [vmem:[#allocation9 + $0x98] sm:$0xff]
        %v518 = vld [vmem:[#allocation9 + $0xa0] sm:$0xff]
        %v519 = vld [vmem:[#allocation9 + $0xa8] sm:$0xff]
        %v520 = vld [vmem:[#allocation9 + $0xb0] sm:$0xff]
        %v521 = vld [vmem:[#allocation9 + $0xb8] sm:$0xff]
        %v522 = vld [vmem:[#allocation9 + $0xc0] sm:$0xff]
        %v523 = vld [vmem:[#allocation9 + $0xc8] sm:$0xff]
        %v524 = vld [vmem:[#allocation9 + $0xd0] sm:$0xff]
        %v525 = vld [vmem:[#allocation9 + $0xd8] sm:$0xff]
        %v526 = vld [vmem:[#allocation9 + $0xe0] sm:$0xff]
        %v527 = vld [vmem:[#allocation9 + $0xe8] sm:$0xff]
        %v528 = vld [vmem:[#allocation9 + $0xf0] sm:$0xff]
        %v529 = vld [vmem:[#allocation9 + $0xf8] sm:$0xff]
        %v530 = vld [vmem:[#allocation9 + $0x100] sm:$0xff]
        %v531 = vld [vmem:[#allocation9 + $0x108] sm:$0xff]
        %v532 = vld [vmem:[#allocation9 + $0x110] sm:$0xff]
        %v533 = vld [vmem:[#allocation9 + $0x118] sm:$0xff]
        %v534 = vld [vmem:[#allocation9 + $0x120] sm:$0xff]
        %v535 = vld [vmem:[#allocation9 + $0x128] sm:$0xff]
        %v536 = vld [vmem:[#allocation9 + $0x130] sm:$0xff]
        %v537 = vld [vmem:[#allocation9 + $0x138] sm:$0xff]
        %v538 = vld [vmem:[#allocation9 + $0x140] sm:$0xff]
        %v539 = vld [vmem:[#allocation9 + $0x148] sm:$0xff]
        %v540 = vld [vmem:[#allocation9 + $0x150] sm:$0xff]
        %v541 = vld [vmem:[#allocation9 + $0x158] sm:$0xff]
        %v542 = vld [vmem:[#allocation9 + $0x160] sm:$0xff]
        %v543 = vld [vmem:[#allocation9 + $0x168] sm:$0xff]
        %v544 = vld [vmem:[#allocation9 + $0x170] sm:$0xff]
        %v545 = vld [vmem:[#allocation9 + $0x178] sm:$0xff]
        %v546 = vld [vmem:[#allocation9 + $0x180] sm:$0xff]
        %v547 = vld [vmem:[#allocation9 + $0x188] sm:$0xff]
        %v548 = vld [vmem:[#allocation9 + $0x190] sm:$0xff]
        %v549 = vld [vmem:[#allocation9 + $0x198] sm:$0xff]
        %v550 = vld [vmem:[#allocation9 + $0x1a0] sm:$0xff]
        %v551 = vld [vmem:[#allocation9 + $0x1a8] sm:$0xff]
        %v552 = vld [vmem:[#allocation9 + $0x1b0] sm:$0xff]
        %v553 = vld [vmem:[#allocation9 + $0x1b8] sm:$0xff]
        %v554 = vld [vmem:[#allocation9 + $0x1c0] sm:$0xff]
        %v555 = vld [vmem:[#allocation9 + $0x1c8] sm:$0xff]
        %v556 = vld [vmem:[#allocation9 + $0x1d0] sm:$0xff]
        %v557 = vld [vmem:[#allocation9 + $0x1d8] sm:$0xff]
        %v558 = vld [vmem:[#allocation9 + $0x1e0] sm:$0xff]
        %v559 = vld [vmem:[#allocation9 + $0x1e8] sm:$0xff]
        %v560 = vld [vmem:[#allocation9 + $0x1f0] sm:$0xff]
        %v561 = vld [vmem:[#allocation9 + $0x1f8] sm:$0xff]
        %v562 = vld [vmem:[#allocation9 + $0x200] sm:$0xff]
        %v563 = vld [vmem:[#allocation9 + $0x208] sm:$0xff]
        %v564 = vld [vmem:[#allocation9 + $0x210] sm:$0xff]
        %v565 = vld [vmem:[#allocation9 + $0x218] sm:$0xff]
        %v566 = vld [vmem:[#allocation9 + $0x220] sm:$0xff]
        %v567 = vld [vmem:[#allocation9 + $0x228] sm:$0xff]
        %v568 = vld [vmem:[#allocation9 + $0x230] sm:$0xff]
        %v569 = vld [vmem:[#allocation9 + $0x238] sm:$0xff]
        %v570 = vld [vmem:[#allocation9 + $0x240] sm:$0xff]
        %v571 = vld [vmem:[#allocation9 + $0x248] sm:$0xff]
        %v572 = vld [vmem:[#allocation9 + $0x250] sm:$0xff]
        %v573 = vld [vmem:[#allocation9 + $0x258] sm:$0xff]
        %v574 = vld [vmem:[#allocation9 + $0x260] sm:$0xff]
        %v575 = vld [vmem:[#allocation9 + $0x268] sm:$0xff]
        %v576 = vld [vmem:[#allocation9 + $0x270] sm:$0xff]
        %v577 = vld [vmem:[#allocation9 + $0x278] sm:$0xff]
        %v578 = vld [vmem:[#allocation9 + $0x280] sm:$0xff]
        %v579 = vld [vmem:[#allocation9 + $0x288] sm:$0xff]
        %v580 = vld [vmem:[#allocation9 + $0x290] sm:$0xff]
        %v581 = vld [vmem:[#allocation9 + $0x298] sm:$0xff]
        %v582 = vld [vmem:[#allocation9 + $0x2a0] sm:$0xff]
        %v583 = vld [vmem:[#allocation9 + $0x2a8] sm:$0xff]
        %v584 = vld [vmem:[#allocation9 + $0x2b0] sm:$0xff]
        %v585 = vld [vmem:[#allocation9 + $0x2b8] sm:$0xff]
        %v586 = vld [vmem:[#allocation9 + $0x2c0] sm:$0xff]
        %v587 = vld [vmem:[#allocation9 + $0x2c8] sm:$0xff]
        %v588 = vld [vmem:[#allocation9 + $0x2d0] sm:$0xff]
        %v589 = vld [vmem:[#allocation9 + $0x2d8] sm:$0xff]
        %v590 = vld [vmem:[#allocation9 + $0x2e0] sm:$0xff]
        %v591 = vld [vmem:[#allocation9 + $0x2e8] sm:$0xff]
        %v592 = vld [vmem:[#allocation9 + $0x2f0] sm:$0xff]
        %v593 = vld [vmem:[#allocation9 + $0x2f8] sm:$0xff]
        %v594 = vld [vmem:[#allocation9 + $0x300] sm:$0xff]
        %v595 = vld [vmem:[#allocation9 + $0x308] sm:$0xff]
        %v596 = vld [vmem:[#allocation9 + $0x310] sm:$0xff]
        %v597 = vld [vmem:[#allocation9 + $0x318] sm:$0xff]
        %v598 = vld [vmem:[#allocation9 + $0x320] sm:$0xff]
        %v599 = vld [vmem:[#allocation9 + $0x328] sm:$0xff]
        %v600 = vld [vmem:[#allocation9 + $0x330] sm:$0xff]
        %v601 = vld [vmem:[#allocation9 + $0x338] sm:$0xff]
        %v602 = vld [vmem:[#allocation9 + $0x340] sm:$0xff]
        %v603 = vld [vmem:[#allocation9 + $0x348] sm:$0xff]
        %v604 = vld [vmem:[#allocation9 + $0x350] sm:$0xff]
        %v605 = vld [vmem:[#allocation9 + $0x358] sm:$0xff]
        %v606 = vld [vmem:[#allocation9 + $0x360] sm:$0xff]
        %v607 = vld [vmem:[#allocation9 + $0x368] sm:$0xff]
        %v608 = vld [vmem:[#allocation9 + $0x370] sm:$0xff]
        %v609 = vld [vmem:[#allocation9 + $0x378] sm:$0xff]
        %v610 = vld [vmem:[#allocation9 + $0x380] sm:$0xff]
        %v611 = vld [vmem:[#allocation9 + $0x388] sm:$0xff]
        %v612 = vld [vmem:[#allocation9 + $0x390] sm:$0xff]
        %v613 = vld [vmem:[#allocation9 + $0x398] sm:$0xff]
        %v614 = vld [vmem:[#allocation9 + $0x3a0] sm:$0xff]
        %v615 = vld [vmem:[#allocation9 + $0x3a8] sm:$0xff]
        %v616 = vld [vmem:[#allocation9 + $0x3b0] sm:$0xff]
        %v617 = vld [vmem:[#allocation9 + $0x3b8] sm:$0xff]
        %v618 = vld [vmem:[#allocation9 + $0x3c0] sm:$0xff]
        %v619 = vld [vmem:[#allocation9 + $0x3c8] sm:$0xff]
        %v620 = vld [vmem:[#allocation9 + $0x3d0] sm:$0xff]
        %v621 = vld [vmem:[#allocation9 + $0x3d8] sm:$0xff]
        %v622 = vld [vmem:[#allocation9 + $0x3e0] sm:$0xff]
        %v623 = vld [vmem:[#allocation9 + $0x3e8] sm:$0xff]
        %v624 = vld [vmem:[#allocation9 + $0x3f0] sm:$0xff]
        %v625 = vld [vmem:[#allocation9 + $0x3f8] sm:$0xff]
        %v626 = vld [vmem:[%s6] sm:$0xf]
        %v628 = vlaneseq
        %v629 = vshrl.u32 %v628, 7
        %v630 = vsub.s32 0, %v629
        %v631 = vrot.slane %v626, %v630
        %v632 = vlaneseq
        %v633 = vshrl.u32 %v632, 7
        %v634 = vsub.s32 1, %v633
        %v635 = vrot.slane %v626, %v634
        %v636 = vlaneseq
        %v637 = vshrl.u32 %v636, 7
        %v638 = vsub.s32 2, %v637
        %v639 = vrot.slane %v626, %v638
        %v640 = vlaneseq
        %v641 = vshrl.u32 %v640, 7
        %v642 = vsub.s32 3, %v641
        %v643 = vrot.slane %v626, %v642
        %648 = vmatprep.subr.mxu0 %v559
        %649 = vmatpush1.msra.mxu0 %v558
        %650 = vmatprep.subr.mxu0 %v555
        %651 = vmatpush1.msra.mxu0 %v554
        %652 = vmatprep.subr.mxu0 %v551
        %653 = vmatpush1.msra.mxu0 %v550
        %654 = vmatprep.subr.mxu0 %v547
        %655 = vmatpush1.msra.mxu0 %v546
        %656 = vmatprep.subr.mxu0 %v543
        %657 = vmatpush1.msra.mxu0 %v542
        %658 = vmatprep.subr.mxu0 %v539
        %659 = vmatpush1.msra.mxu0 %v538
        %660 = vmatprep.subr.mxu0 %v535
        %661 = vmatpush1.msra.mxu0 %v534
        %662 = vmatprep.subr.mxu0 %v531
        %663 = vmatpush1.msra.mxu0 %v530
        %664 = vmatprep.subr.mxu0 %v527
        %665 = vmatpush1.msra.mxu0 %v526
        %666 = vmatprep.subr.mxu0 %v523
        %667 = vmatpush1.msra.mxu0 %v522
        %668 = vmatprep.subr.mxu0 %v519
        %669 = vmatpush1.msra.mxu0 %v518
        %670 = vmatprep.subr.mxu0 %v515
        %671 = vmatpush1.msra.mxu0 %v514
        %672 = vmatprep.subr.mxu0 %v511
        %673 = vmatpush1.msra.mxu0 %v510
        %674 = vmatprep.subr.mxu0 %v507
        %675 = vmatpush1.msra.mxu0 %v506
        %676 = vmatprep.subr.mxu0 %v503
        %677 = vmatpush1.msra.mxu0 %v502
        %678 = vmatprep.subr.mxu0 %v499
        %679 = vmatpush1.msra.mxu0 %v498
        %680 = vmatprep.subr.mxu0 %v623
        %681 = vmatpush2.msra.mxu0 %v622
        %682 = vmatprep.subr.mxu0 %v619
        %683 = vmatpush2.msra.mxu0 %v618
        %684 = vmatprep.subr.mxu0 %v615
        %685 = vmatpush2.msra.mxu0 %v614
        %686 = vmatprep.subr.mxu0 %v611
        %687 = vmatpush2.msra.mxu0 %v610
        %688 = vmatprep.subr.mxu0 %v607
        %689 = vmatpush2.msra.mxu0 %v606
        %690 = vmatprep.subr.mxu0 %v603
        %691 = vmatpush2.msra.mxu0 %v602
        %692 = vmatprep.subr.mxu0 %v599
        %693 = vmatpush2.msra.mxu0 %v598
        %694 = vmatprep.subr.mxu0 %v595
        %695 = vmatpush2.msra.mxu0 %v594
        %696 = vmatprep.subr.mxu0 %v591
        %697 = vmatpush2.msra.mxu0 %v590
        %698 = vmatprep.subr.mxu0 %v587
        %699 = vmatpush2.msra.mxu0 %v586
        %700 = vmatprep.subr.mxu0 %v583
        %701 = vmatpush2.msra.mxu0 %v582
        %702 = vmatprep.subr.mxu0 %v579
        %703 = vmatpush2.msra.mxu0 %v578
        %704 = vmatprep.subr.mxu0 %v575
        %705 = vmatpush2.msra.mxu0 %v574
        %706 = vmatprep.subr.mxu0 %v571
        %707 = vmatpush2.msra.mxu0 %v570
        %708 = vmatprep.subr.mxu0 %v567
        %709 = vmatpush2.msra.mxu0 %v566
        %710 = vmatprep.subr.mxu0 %v563
        %711 = vmatpush2.msra.mxu0 %v562
        %712 = vmatprep.mubr.f32.mxu0 %v406
        %713 = vmatmul.mubr.f32.gmra.mxu0 %v497
        %v714 = vpop.f32.mrf.mxu0
        %v715 = vadd.f32 %v631, %v714
        %v716 = vpop.f32.mrf.mxu0
        %v717 = vadd.f32 %v635, %v716
        %718 = vdwg.mxu0
        %719 = vmatprep.subr.mxu0 %v561
        %720 = vmatpush1.msra.mxu0 %v560
        %721 = vmatprep.subr.mxu0 %v557
        %722 = vmatpush1.msra.mxu0 %v556
        %723 = vmatprep.subr.mxu0 %v553
        %724 = vmatpush1.msra.mxu0 %v552
        %725 = vmatprep.subr.mxu0 %v549
        %726 = vmatpush1.msra.mxu0 %v548
        %727 = vmatprep.subr.mxu0 %v545
        %728 = vmatpush1.msra.mxu0 %v544
        %729 = vmatprep.subr.mxu0 %v541
        %730 = vmatpush1.msra.mxu0 %v540
        %731 = vmatprep.subr.mxu0 %v537
        %732 = vmatpush1.msra.mxu0 %v536
        %733 = vmatprep.subr.mxu0 %v533
        %734 = vmatpush1.msra.mxu0 %v532
        %735 = vmatprep.subr.mxu0 %v529
        %736 = vmatpush1.msra.mxu0 %v528
        %737 = vmatprep.subr.mxu0 %v525
        %738 = vmatpush1.msra.mxu0 %v524
        %739 = vmatprep.subr.mxu0 %v521
        %740 = vmatpush1.msra.mxu0 %v520
        %741 = vmatprep.subr.mxu0 %v517
        %742 = vmatpush1.msra.mxu0 %v516
        %743 = vmatprep.subr.mxu0 %v513
        %744 = vmatpush1.msra.mxu0 %v512
        %745 = vmatprep.subr.mxu0 %v509
        %746 = vmatpush1.msra.mxu0 %v508
        %747 = vmatprep.subr.mxu0 %v505
        %748 = vmatpush1.msra.mxu0 %v504
        %749 = vmatprep.subr.mxu0 %v501
        %750 = vmatpush1.msra.mxu0 %v500
        %751 = vmatprep.subr.mxu0 %v625
        %752 = vmatpush2.msra.mxu0 %v624
        %753 = vmatprep.subr.mxu0 %v621
        %754 = vmatpush2.msra.mxu0 %v620
        %755 = vmatprep.subr.mxu0 %v617
        %756 = vmatpush2.msra.mxu0 %v616
        %757 = vmatprep.subr.mxu0 %v613
        %758 = vmatpush2.msra.mxu0 %v612
        %759 = vmatprep.subr.mxu0 %v609
        %760 = vmatpush2.msra.mxu0 %v608
        %761 = vmatprep.subr.mxu0 %v605
        %762 = vmatpush2.msra.mxu0 %v604
        %763 = vmatprep.subr.mxu0 %v601
        %764 = vmatpush2.msra.mxu0 %v600
        %765 = vmatprep.subr.mxu0 %v597
        %766 = vmatpush2.msra.mxu0 %v596
        %767 = vmatprep.subr.mxu0 %v593
        %768 = vmatpush2.msra.mxu0 %v592
        %769 = vmatprep.subr.mxu0 %v589
        %770 = vmatpush2.msra.mxu0 %v588
        %771 = vmatprep.subr.mxu0 %v585
        %772 = vmatpush2.msra.mxu0 %v584
        %773 = vmatprep.subr.mxu0 %v581
        %774 = vmatpush2.msra.mxu0 %v580
        %775 = vmatprep.subr.mxu0 %v577
        %776 = vmatpush2.msra.mxu0 %v576
        %777 = vmatprep.subr.mxu0 %v573
        %778 = vmatpush2.msra.mxu0 %v572
        %779 = vmatprep.subr.mxu0 %v569
        %780 = vmatpush2.msra.mxu0 %v568
        %781 = vmatprep.subr.mxu0 %v565
        %782 = vmatpush2.msra.mxu0 %v564
        %783 = vmatprep.mubr.f32.mxu0 %v406
        %784 = vmatmul.mubr.f32.gmra.mxu0 %v497
        %v785 = vpop.f32.mrf.mxu0
        %v786 = vadd.f32 %v639, %v785
        %v787 = vpop.f32.mrf.mxu0
        %v788 = vadd.f32 %v643, %v787
        %789 = vdwg.mxu0
        %v790 = vxor.u32 %v715, 2147483648
        %v791 = vmul.f32 %v790, 1.442695
        %v792 = vpow.pop %v791
        %v793 = vadd.f32 %v792, 1.0
        %v794 = vrcp.pop %v793
        %v795 = vmul.f32 1.0, %v794
        %v796 = vxor.u32 %v717, 2147483648
        %v797 = vmul.f32 %v796, 1.442695
        %v798 = vpow.pop %v797
        %v799 = vadd.f32 %v798, 1.0
        %v800 = vrcp.pop %v799
        %v801 = vmul.f32 1.0, %v800
        %v802 = vtanh.pop %v786
        %v803 = vxor.u32 %v788, 2147483648
        %v804 = vmul.f32 %v803, 1.442695
        %v805 = vpow.pop %v804
        %v806 = vadd.f32 %v805, 1.0
        %v807 = vrcp.pop %v806
        %v808 = vmul.f32 1.0, %v807
        %v809 = vmul.f32 %v801, %v408
        %v810 = vmul.f32 %v795, %v802
        %v811 = vadd.f32 %v809, %v810
        %v812 = vtanh.pop %v811
        %v813 = vmul.f32 %v808, %v812
        %v814 = vlaneseq
        %vm815 = vcmp.ge.s32.totalorder %v814, 0
        %vm816 = vcmp.lt.s32.totalorder %v814, 128
        %vm817 = vmand %vm815, %vm816
        %818 = vst.msk [vmem:[#allocation13] sm:$0x1] %vm817, %v813
        %819 = vst.msk [vmem:[#allocation13 + $0x1] sm:$0x1] %vm817, %v811
        %v820 = vld [vmem:[#allocation10] sm:$0xff]
        %v821 = vld [vmem:[#allocation10 + $0x8] sm:$0xff]
        %v822 = vld [vmem:[#allocation10 + $0x10] sm:$0xff]
        %v823 = vld [vmem:[#allocation10 + $0x18] sm:$0xff]
        %v824 = vld [vmem:[#allocation10 + $0x20] sm:$0xff]
        %v825 = vld [vmem:[#allocation10 + $0x28] sm:$0xff]
        %v826 = vld [vmem:[#allocation10 + $0x30] sm:$0xff]
        %v827 = vld [vmem:[#allocation10 + $0x38] sm:$0xff]
        %v828 = vld [vmem:[#allocation10 + $0x40] sm:$0xff]
        %v829 = vld [vmem:[#allocation10 + $0x48] sm:$0xff]
        %v830 = vld [vmem:[#allocation10 + $0x50] sm:$0xff]
        %v831 = vld [vmem:[#allocation10 + $0x58] sm:$0xff]
        %v832 = vld [vmem:[#allocation10 + $0x60] sm:$0xff]
        %v833 = vld [vmem:[#allocation10 + $0x68] sm:$0xff]
        %v834 = vld [vmem:[#allocation10 + $0x70] sm:$0xff]
        %v835 = vld [vmem:[#allocation10 + $0x78] sm:$0xff]
        %v836 = vld [vmem:[%s8] sm:$0x1]
        %837 = vmatprep.subr.mxu0 0.0
        %838 = vmatpush1.msra.mxu0 %v835
        %839 = vmatprep.subr.mxu0 0.0
        %840 = vmatpush1.msra.mxu0 %v834
        %841 = vmatprep.subr.mxu0 0.0
        %842 = vmatpush1.msra.mxu0 %v833
        %843 = vmatprep.subr.mxu0 0.0
        %844 = vmatpush1.msra.mxu0 %v832
        %845 = vmatprep.subr.mxu0 0.0
        %846 = vmatpush1.msra.mxu0 %v831
        %847 = vmatprep.subr.mxu0 0.0
        %848 = vmatpush1.msra.mxu0 %v830
        %849 = vmatprep.subr.mxu0 0.0
        %850 = vmatpush1.msra.mxu0 %v829
        %851 = vmatprep.subr.mxu0 0.0
        %852 = vmatpush1.msra.mxu0 %v828
        %853 = vmatprep.subr.mxu0 0.0
        %854 = vmatpush1.msra.mxu0 %v827
        %855 = vmatprep.subr.mxu0 0.0
        %856 = vmatpush1.msra.mxu0 %v826
        %857 = vmatprep.subr.mxu0 0.0
        %858 = vmatpush1.msra.mxu0 %v825
        %859 = vmatprep.subr.mxu0 0.0
        %860 = vmatpush1.msra.mxu0 %v824
        %861 = vmatprep.subr.mxu0 0.0
        %862 = vmatpush1.msra.mxu0 %v823
        %863 = vmatprep.subr.mxu0 0.0
        %864 = vmatpush1.msra.mxu0 %v822
        %865 = vmatprep.subr.mxu0 0.0
        %866 = vmatpush1.msra.mxu0 %v821
        %867 = vmatprep.subr.mxu0 0.0
        %868 = vmatpush1.msra.mxu0 %v820
        %869 = vmatprep.subr.mxu0 0.0
        %870 = vmatpush2.msra.mxu0 0.0
        %871 = vmatprep.subr.mxu0 0.0
        %872 = vmatpush2.msra.mxu0 0.0
        %873 = vmatprep.subr.mxu0 0.0
        %874 = vmatpush2.msra.mxu0 0.0
        %875 = vmatprep.subr.mxu0 0.0
        %876 = vmatpush2.msra.mxu0 0.0
        %877 = vmatprep.subr.mxu0 0.0
        %878 = vmatpush2.msra.mxu0 0.0
        %879 = vmatprep.subr.mxu0 0.0
        %880 = vmatpush2.msra.mxu0 0.0
        %881 = vmatprep.subr.mxu0 0.0
        %882 = vmatpush2.msra.mxu0 0.0
        %883 = vmatprep.subr.mxu0 0.0
        %884 = vmatpush2.msra.mxu0 0.0
        %885 = vmatprep.subr.mxu0 0.0
        %886 = vmatpush2.msra.mxu0 0.0
        %887 = vmatprep.subr.mxu0 0.0
        %888 = vmatpush2.msra.mxu0 0.0
        %889 = vmatprep.subr.mxu0 0.0
        %890 = vmatpush2.msra.mxu0 0.0
        %891 = vmatprep.subr.mxu0 0.0
        %892 = vmatpush2.msra.mxu0 0.0
        %893 = vmatprep.subr.mxu0 0.0
        %894 = vmatpush2.msra.mxu0 0.0
        %895 = vmatprep.subr.mxu0 0.0
        %896 = vmatpush2.msra.mxu0 0.0
        %897 = vmatprep.subr.mxu0 0.0
        %898 = vmatpush2.msra.mxu0 0.0
        %899 = vmatprep.subr.mxu0 0.0
        %900 = vmatpush2.msra.mxu0 0.0
        %901 = vmatprep.mubr.f32.mxu0 0.0
        %902 = vmatmul.mubr.f32.gmra.mxu0 %v813
        %v903 = vpop.f32.mrf.mxu0
        %v904 = vadd.f32 %v836, %v903
        %v905 = vpop.f32.mrf.mxu0
        %906 = vdwg.mxu0
        %vm907 = vcmask 1040384
        %v908 = vsel %vm907, %v904, -inf
        %909 = vmax.xlane.f32.xlu0 %v908
        %v910 = vpop.xlane.xlu0 %909
        %v911 = vsub.f32 %v904, %v910
        %v912 = vmul.f32 %v911, 1.442695
        %v913 = vpow.pop %v912
        %v914 = vsel %vm907, %v913, 0.0
        %915 = vadd.xlane.f32.xlu0 %v914
        %v916 = vpop.xlane.xlu0 %915
        %v917 = vrcp.pop %v916
        %v918 = vmul.f32 %v913, %v917
        %919 = vst [vmem:[%s389] sm:$0x1] %v918
        %s920 = sand.u32 %s216, 1
        %s921 = scalar_lea.sflag [#allocation6], %s920
        %s922 = sand.u32 %s216, 1
        %s923 = scalar_lea.vmem [#allocation12], %s922
        // Predicated region
        $region73: #{tpu_custom_call.1} parent=51 // pred_check
          %p924 = pneg %p226
        $region74: #{tpu_custom_call.1} parent=51 // pred_check_branch
          %926 = sbr.rel (%p924) target = $region76
        $region75: #{tpu_custom_call.1} parent=51 // pred_region
          %s928 = ssub.s32 16, 16
          %929 = vsyncadd %s921, %s928
          %s930 = smul.addr %s35, 16
          %s931 = scalar_lea.hbm %s9, %s930
          %s933 = sshll.u32 %s923, 4
          %s934 = int_to_ptr.vmem [resolvable:$true] %s933
          %936 = dma.vmem_to_hbm [thread:$0]  %s934, 16, %s931, %s921
        $region76: #{tpu_custom_call.1} parent=51 // pred_fallthru
          _
        // Predicated region
        $region77: #{tpu_custom_call.1} parent=51 // pred_check
          %p937 = pneg %p247
        $region78: #{tpu_custom_call.1} parent=51 // pred_check_branch
          %939 = sbr.rel (%p937) target = $region80
        $region79: #{tpu_custom_call.1} parent=51 // pred_region
          %s941 = ssub.s32 32, 32
          %942 = vsyncadd [#allocation14], %s941
          %s944 = sshll.u32 [#allocation13], 4
          %s945 = int_to_ptr.vmem [resolvable:$true] %s944
          %947 = dma.vmem_to_hbm [thread:$0]  %s945, 32, %s10, [#allocation14]
        $region80: #{tpu_custom_call.1} parent=51 // pred_fallthru
          _
        // Predicated region
        $region81: #{tpu_custom_call.1} parent=51 // pred_check
          %p948 = pneg %p247
        $region82: #{tpu_custom_call.1} parent=51 // pred_check_branch
          %950 = sbr.rel (%p948) target = $region84
        $region83: #{tpu_custom_call.1} parent=51 // pred_region
          %951 = dma.done [#allocation14], 32
        $region84: #{tpu_custom_call.1} parent=51 // pred_fallthru
          _
      $region52: #{tpu_custom_call.1} parent=5 // pred_fallthru
        _
      %p952 = scmp.le.s32.totalorder 2, %s30
      // Predicated region
      $region85: #{tpu_custom_call.1} parent=5 // pred_check
        %p953 = pneg %p952
      $region86: #{tpu_custom_call.1} parent=5 // pred_check_branch
        %955 = sbr.rel (%p953) target = $region88
      $region87: #{tpu_custom_call.1} parent=5 // pred_region
        %s956 = ssub.s32 %s30, 2
        // Predicated region
        $region89: #{tpu_custom_call.1} parent=87 // pred_check
          %p957 = pneg %p232
        $region90: #{tpu_custom_call.1} parent=87 // pred_check_branch
          %959 = sbr.rel (%p957) target = $region92
        $region91: #{tpu_custom_call.1} parent=87 // pred_region
          %s960 = sand.u32 %s217, 1
          %s961 = scalar_lea.sflag [#allocation6], %s960
          %s962 = sand.u32 %s217, 1
          %s963 = scalar_lea.vmem [#allocation12], %s962
          %964 = dma.done %s961, 16
        $region92: #{tpu_custom_call.1} parent=87 // pred_fallthru
          _
      $region88: #{tpu_custom_call.1} parent=5 // pred_fallthru
        _
    $region6: #{tpu_custom_call.1} parent=1 // loop_footer
      %s34 = sadd.s32 1, %s30
    $region7: #{tpu_custom_call.1} parent=1 // loop_footer_branch
      %29 = sbr.rel target = $region3
    $region8: #{tpu_custom_call.1} parent=1 // loop_exit
      _
    %965 = vsyncpa [#allocation5], 1
    %s966 = scalar_lea.sflag [#allocation5], 1
    %967 = vsyncpa %s966, 1
    %968 = vsyncpa [#allocation8], 1
    %969 = vsyncpa [#allocation11], 1
    %970 = vsyncpa [#allocation6], 1
    %s971 = scalar_lea.sflag [#allocation6], 1
    %972 = vsyncpa %s971, 1
    %973 = vsyncpa [#allocation14], 1

</llo_original>
